<compile_context>
chip_gen: v5e
topology: v5e:2x2
jax: 0.10.0
libtpu: 0.0.40
codegen_flags: <defaults>
</compile_context>

<pallas_src>
import functools

import jax
import jax.numpy as jnp
from jax.experimental import pallas as pl
from jax.experimental.pallas import tpu as pltpu


_LANE_WIDTH_CANDIDATES = (512, 256, 128)


# --------------------------------------------------------------------------
# Hardware-aware sizing helpers
# --------------------------------------------------------------------------
def _vmem_capacity_bytes():
    try:
        return int(pltpu.get_tpu_info().vmem_capacity_bytes)
    except Exception:
        return 64 << 20  # v7x-safe default


def _num_tensorcores():
    """2 on megacore / multi-TC chips (v4, v5p, v7x), else 1 (v2/v3/v5e/v6e)."""
    try:
        kind = jax.devices()[0].device_kind.lower()
    except Exception:
        return 1
    return 2 if any(t in kind for t in ("v4", "v5p", "v7")) else 1


def _is_v7():
    try:
        return "v7" in jax.devices()[0].device_kind.lower()
    except Exception:
        return False


def _dim_semantics(n_splits):
    # Plain "parallel" is enough for v4/v5p megacore sharding; on v7x the
    # review asks for CORE_PARALLEL so the second TensorCore actually engages.
    if n_splits == 2 and _is_v7():
        return (pltpu.CORE_PARALLEL, pltpu.ARBITRARY)
    return ("parallel", "arbitrary")


def _grid_split(n_blocks):
    # Only split the row blocks across cores on chips that have 2 TensorCores;
    # on single-TC chips the extra leading axis is pure serial-loop overhead.
    n_splits = 2 if (_num_tensorcores() >= 2 and n_blocks >= 2 and n_blocks % 2 == 0) else 1
    return n_splits, n_blocks // n_splits


def _choose_tile_rows(rows, row_bytes, target_bytes):
    """Largest 8-aligned divisor of `rows` whose block fits ~target_bytes."""
    max_rows = max(8, int(target_bytes // max(1, row_bytes)))
    if rows <= max_rows:
        return rows
    t = (max_rows // 8) * 8
    while t >= 8:
        if rows % t == 0:
            return t
        t -= 8
    # No 8-aligned divisor (rare): fall back to the whole array in one block.
    return rows


def _chunk_rows_for(tile_rows, width):
    """Inner-loop chunk rows: divides tile_rows, multiple of 8, <=16 f32 vregs."""
    for ch in (32, 16, 8):
        if tile_rows % ch == 0 and ch * width <= 16384:
            return ch
    return 8 if tile_rows % 8 == 0 else None


def _vmem_limit(in_block_bytes, out_block_bytes, cap):
    need = 2 * in_block_bytes + 2 * out_block_bytes + (4 << 20)
    return int(max(16 << 20, min(need, (cap * 3) // 4)))


# --------------------------------------------------------------------------
# Kernels
# --------------------------------------------------------------------------
def _simclr_flat_kernel(sim_ref, label_ref, pos_ref, tot_ref, *, chunk_rows):
    """Streaming exp / masked-sum over a lane-dense (tile_rows, W) block."""
    i = pl.program_id(1)  # reduction axis (row blocks within this split)

    @pl.when(i == 0)
    def _():
        pos_ref[...] = jnp.zeros_like(pos_ref)
        tot_ref[...] = jnp.zeros_like(tot_ref)

    tile_rows, width = sim_ref.shape
    n_chunks = tile_rows // chunk_rows
    folds = chunk_rows // 8

    def body(c, carry):
        pos_acc, tot_acc = carry
        r0 = pl.multiple_of(c * chunk_rows, chunk_rows)
        s = sim_ref[pl.ds(r0, chunk_rows), :].astype(jnp.float32)
        lab = label_ref[pl.ds(r0, chunk_rows), :].astype(jnp.float32)
        e = jnp.exp(7.0 * s)
        tot_acc = tot_acc + e.reshape(folds, 8, width).sum(axis=0)
        pos_acc = pos_acc + (e * lab).reshape(folds, 8, width).sum(axis=0)
        return pos_acc, tot_acc

    zeros = jnp.zeros((8, width), jnp.float32)
    pos_acc, tot_acc = jax.lax.fori_loop(0, n_chunks, body, (zeros, zeros))
    pos_ref[0] += pos_acc
    tot_ref[0] += tot_acc


def _simclr_index_kernel(sim_ref, idx_ref, pos_ref, tot_ref, *, chunk_rows):
    """Label-free path: per-row positive column index, mask rebuilt in-kernel."""
    i = pl.program_id(1)

    @pl.when(i == 0)
    def _():
        pos_ref[...] = jnp.zeros_like(pos_ref)
        tot_ref[...] = jnp.zeros_like(tot_ref)

    tile_rows, cols = sim_ref.shape
    n_chunks = tile_rows // chunk_rows
    folds = chunk_rows // 8

    def body(c, carry):
        pos_acc, tot_acc = carry
        r0 = pl.multiple_of(c * chunk_rows, chunk_rows)
        s = sim_ref[pl.ds(r0, chunk_rows), :].astype(jnp.float32)
        idx = idx_ref[pl.ds(r0, chunk_rows), :]                       # (chunk, 1) int32
        col = jax.lax.broadcasted_iota(jnp.int32, (chunk_rows, cols), 1)
        e = jnp.exp(7.0 * s)
        pe = jnp.where(col == idx, e, 0.0)
        tot_acc = tot_acc + e.reshape(folds, 8, cols).sum(axis=0)
        pos_acc = pos_acc + pe.reshape(folds, 8, cols).sum(axis=0)
        return pos_acc, tot_acc

    zeros = jnp.zeros((8, cols), jnp.float32)
    pos_acc, tot_acc = jax.lax.fori_loop(0, n_chunks, body, (zeros, zeros))
    pos_ref[0] += pos_acc
    tot_ref[0] += tot_acc


def _simclr_ragged_kernel(sim_ref, label_ref, pos_ref, tot_ref):
    """Fallback for shapes that cannot be made lane-dense; (1, C) accumulators."""
    i = pl.program_id(0)

    @pl.when(i == 0)
    def _():
        pos_ref[...] = jnp.zeros_like(pos_ref)
        tot_ref[...] = jnp.zeros_like(tot_ref)

    s = sim_ref[...].astype(jnp.float32)
    lab = label_ref[...].astype(jnp.float32)
    e = jnp.exp(7.0 * s)
    pos_ref[0] += jnp.sum(e * lab, axis=0, keepdims=True)
    tot_ref[0] += jnp.sum(e, axis=0, keepdims=True)


# --------------------------------------------------------------------------
# Wrappers
# --------------------------------------------------------------------------
def _finalize(pos_part, tot_part):
    pos = jnp.sum(pos_part)
    tot = jnp.sum(tot_part)
    return -jnp.log(pos / (tot - pos + 1e-8))


def simclr_loss(sim, label):
    """Pallas implementation of SimCLRLoss.forward(sim, label) (dense label)."""
    assert sim.shape == label.shape
    if label.dtype == jnp.bool_:
        label = label.astype(jnp.int8)  # narrow stream; avoids i1 vector loads

    total = int(sim.size)
    cap = _vmem_capacity_bytes()
    target_block_bytes = max(1 << 20, cap // 8)
    s_it = jnp.dtype(sim.dtype).itemsize
    l_it = jnp.dtype(label.dtype).itemsize

    # ---- fast path: flatten to a fixed lane-dense 2-D layout -------------
    width = next((w for w in _LANE_WIDTH_CANDIDATES if total % (8 * w) == 0), None)
    if width is not None:
        rows = total // width
        sim2 = sim.reshape(rows, width)
        lab2 = label.reshape(rows, width)
        row_bytes = width * (s_it + l_it)
        tile_rows = _choose_tile_rows(rows, row_bytes, target_block_bytes)
        chunk = _chunk_rows_for(tile_rows, width)
        n_blocks = rows // tile_rows
        n_splits, bps = _grid_split(n_blocks)

        in_block_bytes = tile_rows * width * (s_it + l_it)
        out_block_bytes = 2 * 8 * width * 4
        cost = pl.CostEstimate(
            flops=4 * total,
            transcendentals=total,
            bytes_accessed=total * (s_it + l_it) + 2 * n_splits * 8 * width * 4)

        in_map = lambda c, i: (c * bps + i, 0)
        out_map = lambda c, i: (c, 0, 0)

        pos_part, tot_part = pl.pallas_call(
            functools.partial(_simclr_flat_kernel, chunk_rows=chunk),
            out_shape=(jax.ShapeDtypeStruct((n_splits, 8, width), jnp.float32),
                       jax.ShapeDtypeStruct((n_splits, 8, width), jnp.float32)),
            grid_spec=pltpu.PrefetchScalarGridSpec(
                num_scalar_prefetch=0,
                grid=(n_splits, bps),
                in_specs=[pl.BlockSpec((tile_rows, width), in_map),
                          pl.BlockSpec((tile_rows, width), in_map)],
                out_specs=[pl.BlockSpec((1, 8, width), out_map),
                           pl.BlockSpec((1, 8, width), out_map)],
            ),
            compiler_params=pltpu.CompilerParams(
                dimension_semantics=_dim_semantics(n_splits),
                vmem_limit_bytes=_vmem_limit(in_block_bytes, out_block_bytes, cap)),
            cost_estimate=cost,
        )(sim2, lab2)
        return _finalize(pos_part, tot_part)

    # ---- ragged fallback: keep 2-D (R, C), reduce over row tiles ----------
    if sim.ndim == 1:
        sim2, lab2 = sim.reshape(1, -1), label.reshape(1, -1)
    else:
        sim2 = sim.reshape(-1, sim.shape[-1])
        lab2 = label.reshape(-1, label.shape[-1])
    R, C = sim2.shape
    row_bytes = C * (s_it + l_it)
    tile_rows = _choose_tile_rows(R, row_bytes, target_block_bytes)
    n_blocks = R // tile_rows
    in_block_bytes = tile_rows * C * (s_it + l_it)
    out_block_bytes = 2 * C * 4
    cost = pl.CostEstimate(flops=4 * total, transcendentals=total,
                           bytes_accessed=total * (s_it + l_it) + 2 * C * 4)

    pos_part, tot_part = pl.pallas_call(
        _simclr_ragged_kernel,
        out_shape=(jax.ShapeDtypeStruct((1, 1, C), jnp.float32),
                   jax.ShapeDtypeStruct((1, 1, C), jnp.float32)),
        grid_spec=pltpu.PrefetchScalarGridSpec(
            num_scalar_prefetch=0,
            grid=(n_blocks,),
            in_specs=[pl.BlockSpec((tile_rows, C), lambda i: (i, 0)),
                      pl.BlockSpec((tile_rows, C), lambda i: (i, 0))],
            out_specs=[pl.BlockSpec((1, 1, C), lambda i: (0, 0, 0)),
                       pl.BlockSpec((1, 1, C), lambda i: (0, 0, 0))],
        ),
        compiler_params=pltpu.CompilerParams(
            dimension_semantics=("arbitrary",),
            vmem_limit_bytes=_vmem_limit(in_block_bytes, out_block_bytes, cap)),
        cost_estimate=cost,
    )(sim2, lab2)
    return _finalize(pos_part, tot_part)


def simclr_loss_from_pos_index(sim, pos_index):
    """Label-free SimCLR loss: label[r, c] == 1 iff c == pos_index[r].

    Avoids streaming the dense label matrix from HBM (the mask is rebuilt
    in-kernel from a per-row int32 column index), ~halving HBM traffic.
    """
    if sim.ndim == 1:
        sim = sim.reshape(1, -1)
    elif sim.ndim > 2:
        sim = sim.reshape(-1, sim.shape[-1])
    R, C = sim.shape
    pos_index = jnp.asarray(pos_index, jnp.int32).reshape(-1)
    assert pos_index.shape[0] == R

    if R % 8 != 0:
        # Ragged row count: fall back to the dense-label path.
        return simclr_loss(sim, jax.nn.one_hot(pos_index, C, dtype=jnp.float32))

    total = int(sim.size)
    cap = _vmem_capacity_bytes()
    target_block_bytes = max(1 << 20, cap // 8)
    s_it = jnp.dtype(sim.dtype).itemsize
    row_bytes = C * s_it + 4
    tile_rows = _choose_tile_rows(R, row_bytes, target_block_bytes)
    chunk = _chunk_rows_for(tile_rows, C)
    n_blocks = R // tile_rows
    n_splits, bps = _grid_split(n_blocks)

    in_block_bytes = tile_rows * (C * s_it + 4)
    out_block_bytes = 2 * 8 * C * 4
    cost = pl.CostEstimate(flops=4 * total, transcendentals=total,
                           bytes_accessed=total * s_it + R * 4 + 2 * n_splits * 8 * C * 4)

    in_map = lambda c, i: (c * bps + i, 0)
    out_map = lambda c, i: (c, 0, 0)

    pos_part, tot_part = pl.pallas_call(
        functools.partial(_simclr_index_kernel, chunk_rows=chunk),
        out_shape=(jax.ShapeDtypeStruct((n_splits, 8, C), jnp.float32),
                   jax.ShapeDtypeStruct((n_splits, 8, C), jnp.float32)),
        grid_spec=pltpu.PrefetchScalarGridSpec(
            num_scalar_prefetch=0,
            grid=(n_splits, bps),
            in_specs=[pl.BlockSpec((tile_rows, C), in_map),
                      pl.BlockSpec((tile_rows, 1), in_map)],
            out_specs=[pl.BlockSpec((1, 8, C), out_map),
                       pl.BlockSpec((1, 8, C), out_map)],
        ),
        compiler_params=pltpu.CompilerParams(
            dimension_semantics=_dim_semantics(n_splits),
            vmem_limit_bytes=_vmem_limit(in_block_bytes, out_block_bytes, cap)),
        cost_estimate=cost,
    )(sim, pos_index.reshape(R, 1))
    return _finalize(pos_part, tot_part)


# --------------------------------------------------------------------------
# Reference + demo
# --------------------------------------------------------------------------
def _reference(sim, label):
    e = jnp.exp(7.0 * sim.astype(jnp.float32))
    pos = jnp.sum(e * label.astype(jnp.float32))
    tot = jnp.sum(e)
    return -jnp.log(pos / (tot - pos + 1e-8))


if __name__ == "__main__":
    key = jax.random.PRNGKey(0)

    # SimCLR-style setup: 2*N augmented views -> (128, 128) similarity matrix;
    # the positive-pair mask pairs view i with view (i + N) % 2N.
    N = 64
    B = 2 * N
    sim = jax.random.uniform(key, (B, B), dtype=jnp.float32, minval=-1.0, maxval=1.0)
    label = jnp.roll(jnp.eye(B, dtype=jnp.float32), N, axis=1)

    ref = jax.block_until_ready(_reference(sim, label))

    # 1) Dense-label path (matches the PyTorch module interface).
    loss = jax.block_until_ready(simclr_loss(sim, label))
    assert jnp.allclose(loss, ref, rtol=1e-4, atol=1e-5), (loss, ref)

    # 2) Label-free path: per-row positive index, mask rebuilt in-kernel.
    pos_idx = (jnp.arange(B, dtype=jnp.int32) + N) % B
    loss_idx = jax.block_until_ready(simclr_loss_from_pos_index(sim, pos_idx))
    assert jnp.allclose(loss_idx, ref, rtol=1e-4, atol=1e-5), (loss_idx, ref)

    # 3) Ragged fallback (shape that cannot be flattened lane-dense).
    k1, k2 = jax.random.split(jax.random.PRNGKey(1))
    sim_r = jax.random.uniform(k1, (6, 100), dtype=jnp.float32, minval=-1.0, maxval=1.0)
    lab_r = (jax.random.uniform(k2, (6, 100)) > 0.9).astype(jnp.float32)
    loss_r = jax.block_until_ready(simclr_loss(sim_r, lab_r))
    ref_r = jax.block_until_ready(_reference(sim_r, lab_r))
    assert jnp.allclose(loss_r, ref_r, rtol=1e-4, atol=1e-5), (loss_r, ref_r)

    print("KERNEL_OK")
</pallas_src>

<mosaic_0001>
module attributes {stable_mosaic.version = 11 : i64} {
  func.func @_simclr_flat_kernel(%arg0: i32, %arg1: i32, %arg2: memref<32x512xf32, #tpu.memory_space<vmem>>, %arg3: memref<32x512xf32, #tpu.memory_space<vmem>>, %arg4: memref<1x8x512xf32, #tpu.memory_space<vmem>>, %arg5: memref<1x8x512xf32, #tpu.memory_space<vmem>>) attributes {dimension_semantics = [#tpu.dimension_semantics<parallel>, #tpu.dimension_semantics<arbitrary>], iteration_bounds = array<i64: 1, 1>, scalar_prefetch = 0 : i64, scratch_operands = 0 : i64, tpu.core_type = #tpu.core_type<tc>, window_params = [{transform_indices = @transform_0, window_bounds = array<i64: 32, 512>}, {transform_indices = @transform_1, window_bounds = array<i64: 32, 512>}, {transform_indices = @transform_2, window_bounds = array<i64: 1, 8, 512>}, {transform_indices = @transform_3, window_bounds = array<i64: 1, 8, 512>}]} {
    %c0_i32 = arith.constant 0 : i32
    %0 = arith.cmpi eq, %arg1, %c0_i32 : i32
    %1 = arith.extui %0 : i1 to i32
    %c0_i32_0 = arith.constant 0 : i32
    %2 = arith.cmpi ne, %1, %c0_i32_0 : i32
    scf.if %2 {
      %cst_18 = arith.constant 0.000000e+00 : f32
      %32 = vector.broadcast %cst_18 : f32 to vector<1x8x512xf32>
      %c0_19 = arith.constant 0 : index
      %c0_20 = arith.constant 0 : index
      %c0_21 = arith.constant 0 : index
      %33 = vector.load %arg4[%c0_19, %c0_20, %c0_21] : memref<1x8x512xf32, #tpu.memory_space<vmem>>, vector<1x8x512xf32>
      tpu.vector_store %arg4[%c0_19, %c0_20, %c0_21], %32 {strides = array<i32>} : memref<1x8x512xf32, #tpu.memory_space<vmem>>, vector<1x8x512xf32>,
      %cst_22 = arith.constant 0.000000e+00 : f32
      %34 = vector.broadcast %cst_22 : f32 to vector<1x8x512xf32>
      %c0_23 = arith.constant 0 : index
      %c0_24 = arith.constant 0 : index
      %c0_25 = arith.constant 0 : index
      %35 = vector.load %arg5[%c0_23, %c0_24, %c0_25] : memref<1x8x512xf32, #tpu.memory_space<vmem>>, vector<1x8x512xf32>
      tpu.vector_store %arg5[%c0_23, %c0_24, %c0_25], %34 {strides = array<i32>} : memref<1x8x512xf32, #tpu.memory_space<vmem>>, vector<1x8x512xf32>,
    } else {
    }
    %cst = arith.constant 0.000000e+00 : f32
    %3 = vector.broadcast %cst : f32 to vector<8x512xf32>
    %c0_i32_1 = arith.constant 0 : i32
    %c32_i32 = arith.constant 32 : i32
    %4 = arith.muli %c0_i32_1, %c32_i32 : i32
    %5 = tpu.assume_multiple %4, 32 : i32
    %6 = arith.index_cast %5 : i32 to index
    %c0 = arith.constant 0 : index
    %7 = vector.load %arg2[%6, %c0] : memref<32x512xf32, #tpu.memory_space<vmem>>, vector<32x512xf32>
    %8 = arith.index_cast %5 : i32 to index
    %c0_2 = arith.constant 0 : index
    %9 = vector.load %arg3[%8, %c0_2] : memref<32x512xf32, #tpu.memory_space<vmem>>, vector<32x512xf32>
    %cst_3 = arith.constant 7.000000e+00 : f32
    %10 = vector.broadcast %cst_3 : f32 to vector<32x512xf32>
    %11 = arith.mulf %10, %7 : vector<32x512xf32>
    %12 = math.exp %11 : vector<32x512xf32>
    %13 = vector.shape_cast %12 : vector<32x512xf32> to vector<4x8x512xf32>
    %cst_4 = arith.constant dense<0.000000e+00> : vector<8x512xf32>
    %14 = vector.multi_reduction <add>, %13, %cst_4 [0] : vector<4x8x512xf32> to vector<8x512xf32>
    %15 = arith.addf %3, %14 : vector<8x512xf32>
    %16 = arith.mulf %12, %9 : vector<32x512xf32>
    %17 = vector.shape_cast %16 : vector<32x512xf32> to vector<4x8x512xf32>
    %cst_5 = arith.constant dense<0.000000e+00> : vector<8x512xf32>
    %18 = vector.multi_reduction <add>, %17, %cst_5 [0] : vector<4x8x512xf32> to vector<8x512xf32>
    %19 = arith.addf %3, %18 : vector<8x512xf32>
    %c1_i32 = arith.constant 1 : i32
    %c0_6 = arith.constant 0 : index
    %c0_7 = arith.constant 0 : index
    %c0_8 = arith.constant 0 : index
    %20 = vector.load %arg4[%c0_6, %c0_7, %c0_8] : memref<1x8x512xf32, #tpu.memory_space<vmem>>, vector<1x8x512xf32>
    %21 = vector.shape_cast %20 : vector<1x8x512xf32> to vector<8x512xf32>
    %22 = arith.addf %21, %19 : vector<8x512xf32>
    %c0_9 = arith.constant 0 : index
    %c0_10 = arith.constant 0 : index
    %c0_11 = arith.constant 0 : index
    %23 = vector.load %arg4[%c0_9, %c0_10, %c0_11] : memref<1x8x512xf32, #tpu.memory_space<vmem>>, vector<1x8x512xf32>
    %24 = vector.shape_cast %23 : vector<1x8x512xf32> to vector<8x512xf32>
    %25 = vector.shape_cast %22 : vector<8x512xf32> to vector<1x8x512xf32>
    tpu.vector_store %arg4[%c0_9, %c0_10, %c0_11], %25 {strides = array<i32>} : memref<1x8x512xf32, #tpu.memory_space<vmem>>, vector<1x8x512xf32>,
    %c0_12 = arith.constant 0 : index
    %c0_13 = arith.constant 0 : index
    %c0_14 = arith.constant 0 : index
    %26 = vector.load %arg5[%c0_12, %c0_13, %c0_14] : memref<1x8x512xf32, #tpu.memory_space<vmem>>, vector<1x8x512xf32>
    %27 = vector.shape_cast %26 : vector<1x8x512xf32> to vector<8x512xf32>
    %28 = arith.addf %27, %15 : vector<8x512xf32>
    %c0_15 = arith.constant 0 : index
    %c0_16 = arith.constant 0 : index
    %c0_17 = arith.constant 0 : index
    %29 = vector.load %arg5[%c0_15, %c0_16, %c0_17] : memref<1x8x512xf32, #tpu.memory_space<vmem>>, vector<1x8x512xf32>
    %30 = vector.shape_cast %29 : vector<1x8x512xf32> to vector<8x512xf32>
    %31 = vector.shape_cast %28 : vector<8x512xf32> to vector<1x8x512xf32>
    tpu.vector_store %arg5[%c0_15, %c0_16, %c0_17], %31 {strides = array<i32>} : memref<1x8x512xf32, #tpu.memory_space<vmem>>, vector<1x8x512xf32>,
    return
  }
  func.func @transform_0(%arg0: i32, %arg1: i32) -> (i32, i32) {
    %c1_i32 = arith.constant 1 : i32
    %0 = arith.muli %arg0, %c1_i32 : i32
    %1 = arith.addi %0, %arg1 : i32
    %c0_i32 = arith.constant 0 : i32
    %c0_i32_0 = arith.constant 0 : i32
    return %1, %c0_i32 : i32, i32
  }
  func.func @transform_1(%arg0: i32, %arg1: i32) -> (i32, i32) {
    %c1_i32 = arith.constant 1 : i32
    %0 = arith.muli %arg0, %c1_i32 : i32
    %1 = arith.addi %0, %arg1 : i32
    %c0_i32 = arith.constant 0 : i32
    %c0_i32_0 = arith.constant 0 : i32
    return %1, %c0_i32 : i32, i32
  }
  func.func @transform_2(%arg0: i32, %arg1: i32) -> (i32, i32, i32) {
    %c0_i32 = arith.constant 0 : i32
    %c0_i32_0 = arith.constant 0 : i32
    %c0_i32_1 = arith.constant 0 : i32
    return %arg0, %c0_i32, %c0_i32_0 : i32, i32, i32
  }
  func.func @transform_3(%arg0: i32, %arg1: i32) -> (i32, i32, i32) {
    %c0_i32 = arith.constant 0 : i32
    %c0_i32_0 = arith.constant 0 : i32
    %c0_i32_1 = arith.constant 0 : i32
    return %arg0, %c0_i32, %c0_i32_0 : i32, i32, i32
  }
}

</mosaic_0001>

<llo_original>
// kernel: tpu_custom_call.1
$region0: #{tpu_custom_call.1}
  #allocation0 [shape = 'u32[]', space=smem, size = 0x4, offset = 0x4, fixed_abs, tag = 'smem constant byte address 0x4 - core index']
  #allocation1 [shape = 'u32[72,128]{1,0:T(1,128)}', space=vmem, size = 0x9000, scoped, tag = 'internal scratch']
  %s0 = inlined_call_operand.hbm [shape: f32[32,512], index: 0, kind: input, shape index: {}]
  %s1 = inlined_call_operand.hbm [shape: f32[32,512], index: 1, kind: input, shape index: {}]
  %s2 = inlined_call_operand.hbm [shape: f32[1,8,512], index: 2, kind: output, shape index: {0}]
  %s3 = inlined_call_operand.hbm [shape: f32[1,8,512], index: 3, kind: output, shape index: {1}]
  %4 = xla_tuple %s2, %s3
  %s5 = sld [smem:[#allocation0]]
  $region38: #{tpu_custom_call.1} parent=0
    _
  %s7 = ssub.s32 1, %s5
  %s8 = scalar_select 0, %s7, %s5
  $region1: #{tpu_custom_call.1} parent=0
    #allocation2 [shape = 'u8[65536]{0}', space=vmem, size = 0x10000, scoped, tag = 'input window, operand 0, single buffered']
    #allocation3 [shape = 's32[1]{0}', space=sflag, size = 0x4, scoped, tag = 'scoped memory for tpu_custom_call.1']
    #allocation4 [shape = 's32[1]{0}', space=sflag, size = 0x4, scoped, tag = 'scoped memory for tpu_custom_call.1']
    #allocation5 [shape = 'u8[65536]{0}', space=vmem, size = 0x10000, scoped, tag = 'input window, operand 1, single buffered']
    #allocation6 [shape = 's32[1]{0}', space=sflag, size = 0x4, scoped, tag = 'scoped memory for tpu_custom_call.1']
    #allocation7 [shape = 'u8[16384]{0}', space=vmem, size = 0x4000, scoped, tag = 'output window, operand 0, single buffered']
    #allocation8 [shape = 'u8[16384]{0}', space=vmem, size = 0x4000, scoped, tag = 'output window, operand 1, single buffered']
    #allocation9 [shape = 's32[1]{0}', space=sflag, size = 0x4, scoped, tag = 'scoped memory for tpu_custom_call.1']
    %9 = vsyncpa [#allocation3], 0
    %10 = vsyncpa [#allocation6], 0
    %11 = vsyncpa [#allocation4], 0
    %12 = vsyncpa [#allocation9], 0
    // Predicated region
    $region2: #{tpu_custom_call.1} parent=1 // pred_check
      _
    $region3: #{tpu_custom_call.1} parent=1 // pred_check_branch
      %14 = sbr.rel (0) target = $region5
    $region4: #{tpu_custom_call.1} parent=1 // pred_region
      %s15 = sadd.s32 0, 0
      %s16 = smul.u32 4, %s15
      %18 = vsyncadd [#allocation3], 0
      %s19 = smul.addr %s16, 4
      %s20 = smul.addr %s19, 8
      %s21 = scalar_lea.hbm %s0, %s20
      %s22 = sshll.u32 %s21, 4
      %s23 = int_to_ptr.hbm [resolvable:$true] %s22
      %s24 = sshll.u32 [#allocation2], 4
      %s25 = int_to_ptr.vmem [resolvable:$true] %s24
      %30 = dma.hbm_to_vmem [thread:$0]  %s23, 2048, %s25, [#allocation3], 512, 512, 32
    $region5: #{tpu_custom_call.1} parent=1 // pred_fallthru
      _
    // Predicated region
    $region6: #{tpu_custom_call.1} parent=1 // pred_check
      _
    $region7: #{tpu_custom_call.1} parent=1 // pred_check_branch
      %32 = sbr.rel (0) target = $region9
    $region8: #{tpu_custom_call.1} parent=1 // pred_region
      %s33 = sadd.s32 0, 0
      %s34 = smul.u32 4, %s33
      %36 = vsyncadd [#allocation6], 0
      %s37 = smul.addr %s34, 4
      %s38 = smul.addr %s37, 8
      %s39 = scalar_lea.hbm %s1, %s38
      %s40 = sshll.u32 %s39, 4
      %s41 = int_to_ptr.hbm [resolvable:$true] %s40
      %s42 = sshll.u32 [#allocation5], 4
      %s43 = int_to_ptr.vmem [resolvable:$true] %s42
      %48 = dma.hbm_to_vmem [thread:$0]  %s41, 2048, %s43, [#allocation6], 512, 512, 32
    $region9: #{tpu_custom_call.1} parent=1 // pred_fallthru
      _
    // Predicated region
    $region10: #{tpu_custom_call.1} parent=1 // pred_check
      _
    $region11: #{tpu_custom_call.1} parent=1 // pred_check_branch
      %50 = sbr.rel (0) target = $region13
    $region12: #{tpu_custom_call.1} parent=1 // pred_region
      %52 = dma.done [#allocation3], 2048
    $region13: #{tpu_custom_call.1} parent=1 // pred_fallthru
      _
    // Predicated region
    $region14: #{tpu_custom_call.1} parent=1 // pred_check
      _
    $region15: #{tpu_custom_call.1} parent=1 // pred_check_branch
      %54 = sbr.rel (0) target = $region17
    $region16: #{tpu_custom_call.1} parent=1 // pred_region
      %56 = dma.done [#allocation6], 2048
    $region17: #{tpu_custom_call.1} parent=1 // pred_fallthru
      _
    %s57 = sadd.s32 0, 0
    %s58 = smul.u32 4, %s57
    %s59 = sadd.s32 0, 0
    %s60 = smul.u32 4, %s59
    %p61 = scmp.eq.s32.totalorder 0, 0
    // Predicated region
    $region18: #{tpu_custom_call.1} parent=1 // pred_check
      %p62 = pneg %p61
    $region19: #{tpu_custom_call.1} parent=1 // pred_check_branch
      %64 = sbr.rel (%p62) target = $region21
    $region20: #{tpu_custom_call.1} parent=1 // pred_region
      %65 = vst [vmem:[#allocation7] sm:$0xff] 0.0
      %66 = vst [vmem:[#allocation7 + $0x8] sm:$0xff] 0.0
      %67 = vst [vmem:[#allocation7 + $0x10] sm:$0xff] 0.0
      %68 = vst [vmem:[#allocation7 + $0x18] sm:$0xff] 0.0
      %69 = vst [vmem:[#allocation8] sm:$0xff] 0.0
      %70 = vst [vmem:[#allocation8 + $0x8] sm:$0xff] 0.0
      %71 = vst [vmem:[#allocation8 + $0x10] sm:$0xff] 0.0
      %72 = vst [vmem:[#allocation8 + $0x18] sm:$0xff] 0.0
    $region21: #{tpu_custom_call.1} parent=1 // pred_fallthru
      _
    %s73 = smul.u32 0, 4
    %s74 = smul.addr %s73, 8
    %s75 = scalar_lea.vmem [#allocation2], %s74
    %v76 = vld [vmem:[%s75] sm:$0xff]
    %v77 = vld [vmem:[%s75 + $0x8] sm:$0xff]
    %v78 = vld [vmem:[%s75 + $0x10] sm:$0xff]
    %v79 = vld [vmem:[%s75 + $0x18] sm:$0xff]
    %v80 = vld [vmem:[%s75 + $0x20] sm:$0xff]
    %v81 = vld [vmem:[%s75 + $0x28] sm:$0xff]
    %v82 = vld [vmem:[%s75 + $0x30] sm:$0xff]
    %v83 = vld [vmem:[%s75 + $0x38] sm:$0xff]
    %v84 = vld [vmem:[%s75 + $0x40] sm:$0xff]
    %v85 = vld [vmem:[%s75 + $0x48] sm:$0xff]
    %v86 = vld [vmem:[%s75 + $0x50] sm:$0xff]
    %v87 = vld [vmem:[%s75 + $0x58] sm:$0xff]
    %v88 = vld [vmem:[%s75 + $0x60] sm:$0xff]
    %v89 = vld [vmem:[%s75 + $0x68] sm:$0xff]
    %v90 = vld [vmem:[%s75 + $0x70] sm:$0xff]
    %v91 = vld [vmem:[%s75 + $0x78] sm:$0xff]
    %s92 = smul.addr %s73, 8
    %s93 = scalar_lea.vmem [#allocation5], %s92
    %v94 = vld [vmem:[%s93] sm:$0xff]
    %v95 = vld [vmem:[%s93 + $0x8] sm:$0xff]
    %v96 = vld [vmem:[%s93 + $0x10] sm:$0xff]
    %v97 = vld [vmem:[%s93 + $0x18] sm:$0xff]
    %v98 = vld [vmem:[%s93 + $0x20] sm:$0xff]
    %v99 = vld [vmem:[%s93 + $0x28] sm:$0xff]
    %v100 = vld [vmem:[%s93 + $0x30] sm:$0xff]
    %v101 = vld [vmem:[%s93 + $0x38] sm:$0xff]
    %v102 = vld [vmem:[%s93 + $0x40] sm:$0xff]
    %v103 = vld [vmem:[%s93 + $0x48] sm:$0xff]
    %v104 = vld [vmem:[%s93 + $0x50] sm:$0xff]
    %v105 = vld [vmem:[%s93 + $0x58] sm:$0xff]
    %v106 = vld [vmem:[%s93 + $0x60] sm:$0xff]
    %v107 = vld [vmem:[%s93 + $0x68] sm:$0xff]
    %v108 = vld [vmem:[%s93 + $0x70] sm:$0xff]
    %v109 = vld [vmem:[%s93 + $0x78] sm:$0xff]
    %v110 = vmul.f32 %v76, 7.0
    %v111 = vmul.f32 %v77, 7.0
    %v112 = vmul.f32 %v78, 7.0
    %v113 = vmul.f32 %v79, 7.0
    %v114 = vmul.f32 %v80, 7.0
    %v115 = vmul.f32 %v81, 7.0
    %v116 = vmul.f32 %v82, 7.0
    %v117 = vmul.f32 %v83, 7.0
    %v118 = vmul.f32 %v84, 7.0
    %v119 = vmul.f32 %v85, 7.0
    %v120 = vmul.f32 %v86, 7.0
    %v121 = vmul.f32 %v87, 7.0
    %v122 = vmul.f32 %v88, 7.0
    %v123 = vmul.f32 %v89, 7.0
    %v124 = vmul.f32 %v90, 7.0
    %v125 = vmul.f32 %v91, 7.0
    %v126 = vmul.f32 %v110, 1.442695
    %v127 = vpow.pop %v126
    %v128 = vmul.f32 %v111, 1.442695
    %v129 = vpow.pop %v128
    %v130 = vmul.f32 %v112, 1.442695
    %v131 = vpow.pop %v130
    %v132 = vmul.f32 %v113, 1.442695
    %v133 = vpow.pop %v132
    %v134 = vmul.f32 %v114, 1.442695
    %v135 = vpow.pop %v134
    %v136 = vmul.f32 %v115, 1.442695
    %v137 = vpow.pop %v136
    %v138 = vmul.f32 %v116, 1.442695
    %v139 = vpow.pop %v138
    %v140 = vmul.f32 %v117, 1.442695
    %v141 = vpow.pop %v140
    %v142 = vmul.f32 %v118, 1.442695
    %v143 = vpow.pop %v142
    %v144 = vmul.f32 %v119, 1.442695
    %v145 = vpow.pop %v144
    %v146 = vmul.f32 %v120, 1.442695
    %v147 = vpow.pop %v146
    %v148 = vmul.f32 %v121, 1.442695
    %v149 = vpow.pop %v148
    %v150 = vmul.f32 %v122, 1.442695
    %v151 = vpow.pop %v150
    %v152 = vmul.f32 %v123, 1.442695
    %v153 = vpow.pop %v152
    %v154 = vmul.f32 %v124, 1.442695
    %v155 = vpow.pop %v154
    %v156 = vmul.f32 %v125, 1.442695
    %v157 = vpow.pop %v156
    %v158 = vadd.f32 %v127, %v135
    %v159 = vadd.f32 %v158, %v143
    %v160 = vadd.f32 %v159, %v151
    %v161 = vadd.f32 %v129, %v137
    %v162 = vadd.f32 %v161, %v145
    %v163 = vadd.f32 %v162, %v153
    %v164 = vadd.f32 %v131, %v139
    %v165 = vadd.f32 %v164, %v147
    %v166 = vadd.f32 %v165, %v155
    %v167 = vadd.f32 %v133, %v141
    %v168 = vadd.f32 %v167, %v149
    %v169 = vadd.f32 %v168, %v157
    %v170 = vadd.f32 %v160, 0.0
    %v171 = vadd.f32 %v163, 0.0
    %v172 = vadd.f32 %v166, 0.0
    %v173 = vadd.f32 %v169, 0.0
    %v174 = vmul.f32 %v127, %v94
    %v175 = vmul.f32 %v129, %v95
    %v176 = vmul.f32 %v131, %v96
    %v177 = vmul.f32 %v133, %v97
    %v178 = vmul.f32 %v135, %v98
    %v179 = vmul.f32 %v137, %v99
    %v180 = vmul.f32 %v139, %v100
    %v181 = vmul.f32 %v141, %v101
    %v182 = vmul.f32 %v143, %v102
    %v183 = vmul.f32 %v145, %v103
    %v184 = vmul.f32 %v147, %v104
    %v185 = vmul.f32 %v149, %v105
    %v186 = vmul.f32 %v151, %v106
    %v187 = vmul.f32 %v153, %v107
    %v188 = vmul.f32 %v155, %v108
    %v189 = vmul.f32 %v157, %v109
    %v190 = vadd.f32 %v174, %v178
    %v191 = vadd.f32 %v190, %v182
    %v192 = vadd.f32 %v191, %v186
    %v193 = vadd.f32 %v175, %v179
    %v194 = vadd.f32 %v193, %v183
    %v195 = vadd.f32 %v194, %v187
    %v196 = vadd.f32 %v176, %v180
    %v197 = vadd.f32 %v196, %v184
    %v198 = vadd.f32 %v197, %v188
    %v199 = vadd.f32 %v177, %v181
    %v200 = vadd.f32 %v199, %v185
    %v201 = vadd.f32 %v200, %v189
    %v202 = vadd.f32 %v192, 0.0
    %v203 = vadd.f32 %v195, 0.0
    %v204 = vadd.f32 %v198, 0.0
    %v205 = vadd.f32 %v201, 0.0
    %v206 = vld [vmem:[#allocation7] sm:$0xff]
    %v207 = vld [vmem:[#allocation7 + $0x8] sm:$0xff]
    %v208 = vld [vmem:[#allocation7 + $0x10] sm:$0xff]
    %v209 = vld [vmem:[#allocation7 + $0x18] sm:$0xff]
    %v210 = vadd.f32 %v206, %v202
    %v211 = vadd.f32 %v207, %v203
    %v212 = vadd.f32 %v208, %v204
    %v213 = vadd.f32 %v209, %v205
    %214 = vst [vmem:[#allocation7] sm:$0xff] %v210
    %215 = vst [vmem:[#allocation7 + $0x8] sm:$0xff] %v211
    %216 = vst [vmem:[#allocation7 + $0x10] sm:$0xff] %v212
    %217 = vst [vmem:[#allocation7 + $0x18] sm:$0xff] %v213
    %v218 = vld [vmem:[#allocation8] sm:$0xff]
    %v219 = vld [vmem:[#allocation8 + $0x8] sm:$0xff]
    %v220 = vld [vmem:[#allocation8 + $0x10] sm:$0xff]
    %v221 = vld [vmem:[#allocation8 + $0x18] sm:$0xff]
    %v222 = vadd.f32 %v218, %v170
    %v223 = vadd.f32 %v219, %v171
    %v224 = vadd.f32 %v220, %v172
    %v225 = vadd.f32 %v221, %v173
    %226 = vst [vmem:[#allocation8] sm:$0xff] %v222
    %227 = vst [vmem:[#allocation8 + $0x8] sm:$0xff] %v223
    %228 = vst [vmem:[#allocation8 + $0x10] sm:$0xff] %v224
    %229 = vst [vmem:[#allocation8 + $0x18] sm:$0xff] %v225
    // Predicated region
    $region22: #{tpu_custom_call.1} parent=1 // pred_check
      _
    $region23: #{tpu_custom_call.1} parent=1 // pred_check_branch
      %231 = sbr.rel (0) target = $region25
    $region24: #{tpu_custom_call.1} parent=1 // pred_region
      %233 = vsyncadd [#allocation4], 0
      %s235 = sshll.u32 [#allocation7], 4
      %s236 = int_to_ptr.vmem [resolvable:$true] %s235
      %s237 = sshll.u32 %s2, 4
      %s238 = int_to_ptr.hbm [resolvable:$true] %s237
      %240 = dma.vmem_to_hbm [thread:$0]  %s236, 512, %s238, [#allocation4]
    $region25: #{tpu_custom_call.1} parent=1 // pred_fallthru
      _
    // Predicated region
    $region26: #{tpu_custom_call.1} parent=1 // pred_check
      _
    $region27: #{tpu_custom_call.1} parent=1 // pred_check_branch
      %242 = sbr.rel (0) target = $region29
    $region28: #{tpu_custom_call.1} parent=1 // pred_region
      %244 = vsyncadd [#allocation9], 0
      %s246 = sshll.u32 [#allocation8], 4
      %s247 = int_to_ptr.vmem [resolvable:$true] %s246
      %s248 = sshll.u32 %s3, 4
      %s249 = int_to_ptr.hbm [resolvable:$true] %s248
      %251 = dma.vmem_to_hbm [thread:$0]  %s247, 512, %s249, [#allocation9]
    $region29: #{tpu_custom_call.1} parent=1 // pred_fallthru
      _
    // Predicated region
    $region30: #{tpu_custom_call.1} parent=1 // pred_check
      _
    $region31: #{tpu_custom_call.1} parent=1 // pred_check_branch
      %253 = sbr.rel (0) target = $region33
    $region32: #{tpu_custom_call.1} parent=1 // pred_region
      %255 = dma.done [#allocation4], 512
    $region33: #{tpu_custom_call.1} parent=1 // pred_fallthru
      _
    // Predicated region
    $region34: #{tpu_custom_call.1} parent=1 // pred_check
      _
    $region35: #{tpu_custom_call.1} parent=1 // pred_check_branch
      %257 = sbr.rel (0) target = $region37
    $region36: #{tpu_custom_call.1} parent=1 // pred_region
      %259 = dma.done [#allocation9], 512
    $region37: #{tpu_custom_call.1} parent=1 // pred_fallthru
      _
    %260 = vsyncpa [#allocation3], 1
    %261 = vsyncpa [#allocation6], 1
    %262 = vsyncpa [#allocation4], 1
    %263 = vsyncpa [#allocation9], 1

</llo_original>
